<compile_context>
chip_gen: v7x
topology: tpu7x:2x2x1
jax: 0.10.0
libtpu: 0.0.40
codegen_flags: <defaults>
</compile_context>

<pallas_src>
import jax
import jax.numpy as jnp
from jax.experimental import pallas as pl
from jax.experimental.pallas import tpu as pltpu


def _round_up(x, m):
    return ((x + m - 1) // m) * m


def _choose_tile(M, tm):
    # Clamp to M (rounded up to 8 sublanes) for tiny inputs.
    TM = min(tm, max(8, _round_up(M, 8)))
    # v7x megacore: keep >=2 grid steps when M is large enough to split, so the
    # "parallel" token axis gives both TensorCores work (no-op on v5e/v6e).
    if (M + TM - 1) // TM < 2 and M >= 1024:
        TM = max(512, _round_up((M + 1) // 2, 8))
    return TM


def _wrapped_model_kernel(ids_ref, wf_ref, w2_ref, b2_ref, wout_ref, out_ref):
    # ids : (TM, 1)  int32
    # wf  : (V, 128) bf16   = [ emb (H cols) | emb@w1+b1 (F cols) | zero pad ]
    # w2  : (F, H)   bf16
    # b2  : (1, H)   f32
    # wout: (H, V)   bf16
    # out : (TM, V)  f32 or bf16
    ids = ids_ref[...]                                   # (TM, 1)
    tm = ids.shape[0]
    vocab = wf_ref.shape[0]
    F, H = w2_ref.shape

    # Fused embedding gather + MLP-up: one_hot(ids) @ W_fused on the MXU with a
    # full K=128 contraction (bf16 in, f32 acc).
    vocab_iota = jax.lax.broadcasted_iota(jnp.int32, (tm, vocab), 1)
    onehot = (vocab_iota == ids).astype(jnp.bfloat16)    # (TM, V)
    z = jnp.dot(onehot, wf_ref[...],
                preferred_element_type=jnp.float32)      # (TM, 128) f32

    x = z[:, :H]                                         # residual (TM, H)
    h = jax.nn.gelu(z[:, H:H + F], approximate=True)     # (TM, F), EUP tanh

    # MLP down + bias + residual (f32 adds).
    y = jnp.dot(h.astype(jnp.bfloat16), w2_ref[...],
                preferred_element_type=jnp.float32) + b2_ref[...] + x

    # Output projection to V=128 lanes (lane-dense output block).
    out_ref[...] = jnp.dot(y.astype(jnp.bfloat16), wout_ref[...],
                           preferred_element_type=jnp.float32
                           ).astype(out_ref.dtype)


def fuse_params(params):
    """Host-side prep: fuse emb / (emb@w1+b1), zero-pad to 128 lanes, cast bf16."""
    emb, w1, b1, w2, b2, wout = (params["emb"], params["w1"], params["b1"],
                                 params["w2"], params["b2"], params["wout"])
    V, H = emb.shape
    F = w1.shape[1]
    wf = jnp.concatenate([emb, emb @ w1 + b1], axis=1)   # (V, H+F) f32
    pad_cols = _round_up(H + F, 128) - (H + F)
    if pad_cols:
        wf = jnp.pad(wf, ((0, 0), (0, pad_cols)))
    return {
        "wf":   wf.astype(jnp.bfloat16),                 # (V, 128) bf16
        "w2":   w2.astype(jnp.bfloat16),                 # (F, H)   bf16
        "b2":   b2.astype(jnp.float32),                  # (1, H)   f32
        "wout": wout.astype(jnp.bfloat16),               # (H, V)   bf16
        "dims": (V, H, F),
    }


def wrap_model_forward(input_ids, fused, tm=1024, out_dtype=jnp.float32):
    """Equivalent of WrapModel(model)(input_ids) -> outputs[0] (the logits)."""
    wf, w2, b2, wout = fused["wf"], fused["w2"], fused["b2"], fused["wout"]
    V, H, F = fused["dims"]
    B, S = input_ids.shape
    M = B * S

    TM = _choose_tile(M, tm)
    grid = pl.cdiv(M, TM)
    M_pad = grid * TM

    ids = input_ids.reshape(-1).astype(jnp.int32)
    if M_pad != M:
        ids = jnp.pad(ids, (0, M_pad - M))               # pad with token 0
    ids2d = ids.reshape(M_pad, 1)

    weight_spec = lambda shape: pl.BlockSpec(shape, lambda i: (0, 0))

    logits = pl.pallas_call(
        _wrapped_model_kernel,
        out_shape=jax.ShapeDtypeStruct((M_pad, V), out_dtype),
        grid=(grid,),
        in_specs=[
            pl.BlockSpec((TM, 1), lambda i: (i, 0)),     # ids   (streamed)
            weight_spec(wf.shape),                       # fused emb / up-proj
            weight_spec(w2.shape),                       # w2    (resident)
            weight_spec(b2.shape),                       # b2
            weight_spec(wout.shape),                     # wout
        ],
        out_specs=pl.BlockSpec((TM, V), lambda i: (i, 0)),
        compiler_params=pltpu.CompilerParams(
            dimension_semantics=("parallel",),           # megacore on v7x
        ),
    )(ids2d, wf, w2, b2, wout)

    if M_pad != M:
        logits = logits[:M]
    return logits.reshape(B, S, V)                       # outputs[0]


def init_params(key, vocab=128, hidden=32, ffn=64):
    k = jax.random.split(key, 6)
    params = {
        "emb":  0.02 * jax.random.normal(k[0], (vocab, hidden), jnp.float32),
        "w1":   jax.random.normal(k[1], (hidden, ffn), jnp.float32) / jnp.sqrt(hidden),
        "b1":   jnp.zeros((1, ffn), jnp.float32),
        "w2":   jax.random.normal(k[2], (ffn, hidden), jnp.float32) / jnp.sqrt(ffn),
        "b2":   jnp.zeros((1, hidden), jnp.float32),
        "wout": jax.random.normal(k[3], (hidden, vocab), jnp.float32) / jnp.sqrt(hidden),
    }
    return params


if __name__ == "__main__":
    key = jax.random.PRNGKey(0)
    kp, kx1, kx2, kx3 = jax.random.split(key, 4)

    VOCAB, HIDDEN, FFN = 128, 32, 64
    params = init_params(kp, vocab=VOCAB, hidden=HIDDEN, ffn=FFN)
    fused = fuse_params(params)

    def reference(ids):
        # Pure-JAX reference mirroring the kernel's fused / bf16-operand math.
        bf = jnp.bfloat16
        V, H, F = fused["dims"]
        z = fused["wf"].astype(jnp.float32)[ids.reshape(-1)]          # (M, 128)
        x = z[:, :H]
        h = jax.nn.gelu(z[:, H:H + F], approximate=True)
        y = jnp.dot(h.astype(bf), fused["w2"],
                    preferred_element_type=jnp.float32) + fused["b2"] + x
        logits = jnp.dot(y.astype(bf), fused["wout"],
                         preferred_element_type=jnp.float32)
        return logits.reshape(*ids.shape, V)

    # Small shape consistent with the module (batch=2, seq=8).
    B, S = 2, 8
    ids_small = jax.random.randint(kx1, (B, S), 0, VOCAB, dtype=jnp.int32)
    out_small = jax.block_until_ready(wrap_model_forward(ids_small, fused))
    assert out_small.shape == (B, S, VOCAB)
    assert jnp.allclose(out_small, reference(ids_small), atol=2e-3, rtol=2e-3)

    # Non-divisible M in a single grid step (M=600 -> TM=600, grid=1).
    B2, S2 = 3, 200
    ids_mid = jax.random.randint(kx2, (B2, S2), 0, VOCAB, dtype=jnp.int32)
    out_mid = jax.block_until_ready(wrap_model_forward(ids_mid, fused))
    assert out_mid.shape == (B2, S2, VOCAB)
    assert jnp.allclose(out_mid, reference(ids_mid), atol=2e-3, rtol=2e-3)

    # Larger shape exercising multiple grid steps + padding (M=2800 -> TM=1024,
    # grid=3, padded to 3072 rows); also exercise the bf16-logits flag.
    B3, S3 = 4, 700
    ids_big = jax.random.randint(kx3, (B3, S3), 0, VOCAB, dtype=jnp.int32)
    out_big = jax.block_until_ready(wrap_model_forward(ids_big, fused))
    assert out_big.shape == (B3, S3, VOCAB)
    assert jnp.allclose(out_big, reference(ids_big), atol=2e-3, rtol=2e-3)

    out_big_bf16 = jax.block_until_ready(
        wrap_model_forward(ids_big, fused, out_dtype=jnp.bfloat16))
    assert out_big_bf16.dtype == jnp.bfloat16
    assert jnp.allclose(out_big_bf16.astype(jnp.float32), reference(ids_big),
                        atol=1e-2, rtol=2e-2)

    print("KERNEL_OK")
</pallas_src>

<mosaic_0001>
module attributes {stable_mosaic.version = 11 : i64} {
  func.func @_wrapped_model_kernel(%arg0: i32, %arg1: memref<16x1xi32, #tpu.memory_space<vmem>>, %arg2: memref<128x128xbf16, #tpu.memory_space<vmem>>, %arg3: memref<64x32xbf16, #tpu.memory_space<vmem>>, %arg4: memref<1x32xf32, #tpu.memory_space<vmem>>, %arg5: memref<32x128xbf16, #tpu.memory_space<vmem>>, %arg6: memref<16x128xf32, #tpu.memory_space<vmem>>) attributes {dimension_semantics = [#tpu.dimension_semantics<parallel>], iteration_bounds = array<i64: 1>, scalar_prefetch = 0 : i64, scratch_operands = 0 : i64, tpu.core_type = #tpu.core_type<tc>, window_params = [{transform_indices = @transform_0, window_bounds = array<i64: 16, 1>}, {pipeline_mode = #tpu.pipeline_mode<synchronous>, transform_indices = @transform_1, window_bounds = array<i64: 128, 128>}, {pipeline_mode = #tpu.pipeline_mode<synchronous>, transform_indices = @transform_2, window_bounds = array<i64: 64, 32>}, {pipeline_mode = #tpu.pipeline_mode<synchronous>, transform_indices = @transform_3, window_bounds = array<i64: 1, 32>}, {pipeline_mode = #tpu.pipeline_mode<synchronous>, transform_indices = @transform_4, window_bounds = array<i64: 32, 128>}, {transform_indices = @transform_5, window_bounds = array<i64: 16, 128>}]} {
    %c0 = arith.constant 0 : index
    %c0_0 = arith.constant 0 : index
    %0 = vector.load %arg1[%c0, %c0_0] : memref<16x1xi32, #tpu.memory_space<vmem>>, vector<16x1xi32>
    %1 = tpu.iota {dimensions = array<i32: 1>} : vector<16x128xi32>
    %2 = vector.broadcast %0 : vector<16x1xi32> to vector<16x128xi32>
    %3 = arith.cmpi eq, %1, %2 : vector<16x128xi32>
    %4 = arith.extui %3 : vector<16x128xi1> to vector<16x128xi32>
    %5 = arith.sitofp %4 : vector<16x128xi32> to vector<16x128xf32>
    %6 = arith.truncf %5 : vector<16x128xf32> to vector<16x128xbf16>
    %c0_1 = arith.constant 0 : index
    %c0_2 = arith.constant 0 : index
    %7 = vector.load %arg2[%c0_1, %c0_2] : memref<128x128xbf16, #tpu.memory_space<vmem>>, vector<128x128xbf16>
    %cst = arith.constant dense<0.000000e+00> : vector<16x128xf32>
    %8 = tpu.matmul %6, %7, %cst {dimension_numbers = #tpu.dot_dimension_numbers<[1], [0], [0], [1], [0, 0, 1, 1], [], []>} : vector<16x128xbf16>, vector<128x128xbf16>, vector<16x128xf32> -> vector<16x128xf32>
    %9 = vector.extract_strided_slice %8 {offsets = [0, 0], sizes = [16, 32], strides = [1, 1]} : vector<16x128xf32> to vector<16x32xf32>
    %10 = vector.extract_strided_slice %8 {offsets = [0, 32], sizes = [16, 64], strides = [1, 1]} : vector<16x128xf32> to vector<16x64xf32>
    %11 = arith.mulf %10, %10 : vector<16x64xf32>
    %12 = arith.mulf %10, %11 : vector<16x64xf32>
    %cst_3 = arith.constant 4.471500e-02 : f32
    %13 = vector.broadcast %cst_3 : f32 to vector<16x64xf32>
    %14 = arith.mulf %13, %12 : vector<16x64xf32>
    %15 = arith.addf %10, %14 : vector<16x64xf32>
    %cst_4 = arith.constant 0.797884583 : f32
    %16 = vector.broadcast %cst_4 : f32 to vector<16x64xf32>
    %17 = arith.mulf %16, %15 : vector<16x64xf32>
    %18 = math.tanh %17 : vector<16x64xf32>
    %cst_5 = arith.constant 1.000000e+00 : f32
    %19 = vector.broadcast %cst_5 : f32 to vector<16x64xf32>
    %20 = arith.addf %19, %18 : vector<16x64xf32>
    %cst_6 = arith.constant 5.000000e-01 : f32
    %21 = vector.broadcast %cst_6 : f32 to vector<16x64xf32>
    %22 = arith.mulf %21, %20 : vector<16x64xf32>
    %23 = arith.mulf %10, %22 : vector<16x64xf32>
    %24 = arith.truncf %23 : vector<16x64xf32> to vector<16x64xbf16>
    %c0_7 = arith.constant 0 : index
    %c0_8 = arith.constant 0 : index
    %25 = vector.load %arg3[%c0_7, %c0_8] : memref<64x32xbf16, #tpu.memory_space<vmem>>, vector<64x32xbf16>
    %cst_9 = arith.constant dense<0.000000e+00> : vector<16x32xf32>
    %26 = tpu.matmul %24, %25, %cst_9 {dimension_numbers = #tpu.dot_dimension_numbers<[1], [0], [0], [1], [0, 0, 1, 1], [], []>} : vector<16x64xbf16>, vector<64x32xbf16>, vector<16x32xf32> -> vector<16x32xf32>
    %c0_10 = arith.constant 0 : index
    %c0_11 = arith.constant 0 : index
    %27 = vector.load %arg4[%c0_10, %c0_11] : memref<1x32xf32, #tpu.memory_space<vmem>>, vector<1x32xf32>
    %28 = vector.broadcast %27 : vector<1x32xf32> to vector<16x32xf32>
    %29 = arith.addf %26, %28 : vector<16x32xf32>
    %30 = arith.addf %29, %9 : vector<16x32xf32>
    %31 = arith.truncf %30 : vector<16x32xf32> to vector<16x32xbf16>
    %c0_12 = arith.constant 0 : index
    %c0_13 = arith.constant 0 : index
    %32 = vector.load %arg5[%c0_12, %c0_13] : memref<32x128xbf16, #tpu.memory_space<vmem>>, vector<32x128xbf16>
    %cst_14 = arith.constant dense<0.000000e+00> : vector<16x128xf32>
    %33 = tpu.matmul %31, %32, %cst_14 {dimension_numbers = #tpu.dot_dimension_numbers<[1], [0], [0], [1], [0, 0, 1, 1], [], []>} : vector<16x32xbf16>, vector<32x128xbf16>, vector<16x128xf32> -> vector<16x128xf32>
    %c0_15 = arith.constant 0 : index
    %c0_16 = arith.constant 0 : index
    %34 = vector.load %arg6[%c0_15, %c0_16] : memref<16x128xf32, #tpu.memory_space<vmem>>, vector<16x128xf32>
    tpu.vector_store %arg6[%c0_15, %c0_16], %33 {strides = array<i32>} : memref<16x128xf32, #tpu.memory_space<vmem>>, vector<16x128xf32>,
    return
  }
  func.func @transform_0(%arg0: i32) -> (i32, i32) {
    %c0_i32 = arith.constant 0 : i32
    %c0_i32_0 = arith.constant 0 : i32
    return %arg0, %c0_i32 : i32, i32
  }
  func.func @transform_1(%arg0: i32) -> (i32, i32) {
    %c0_i32 = arith.constant 0 : i32
    %c0_i32_0 = arith.constant 0 : i32
    %c0_i32_1 = arith.constant 0 : i32
    return %c0_i32, %c0_i32_0 : i32, i32
  }
  func.func @transform_2(%arg0: i32) -> (i32, i32) {
    %c0_i32 = arith.constant 0 : i32
    %c0_i32_0 = arith.constant 0 : i32
    %c0_i32_1 = arith.constant 0 : i32
    return %c0_i32, %c0_i32_0 : i32, i32
  }
  func.func @transform_3(%arg0: i32) -> (i32, i32) {
    %c0_i32 = arith.constant 0 : i32
    %c0_i32_0 = arith.constant 0 : i32
    %c0_i32_1 = arith.constant 0 : i32
    return %c0_i32, %c0_i32_0 : i32, i32
  }
  func.func @transform_4(%arg0: i32) -> (i32, i32) {
    %c0_i32 = arith.constant 0 : i32
    %c0_i32_0 = arith.constant 0 : i32
    %c0_i32_1 = arith.constant 0 : i32
    return %c0_i32, %c0_i32_0 : i32, i32
  }
  func.func @transform_5(%arg0: i32) -> (i32, i32) {
    %c0_i32 = arith.constant 0 : i32
    %c0_i32_0 = arith.constant 0 : i32
    return %arg0, %c0_i32 : i32, i32
  }
}

</mosaic_0001>

<llo_original>
// kernel: tpu_custom_call.1
$region0: #{tpu_custom_call.1}
  #allocation0 [shape = 'u32[]', space=smem, size = 0x4, offset = 0x4, fixed_abs, tag = 'smem constant byte address 0x4 - core index']
  #allocation1 [shape = 'u32[144,128]{1,0:T(1,128)}', space=vmem, size = 0x12000, scoped, tag = 'internal scratch']
  %s0 = inlined_call_operand.vmem [shape: s32[16,1], index: 0, kind: input, shape index: {}]
  %s1 = inlined_call_operand.vmem [shape: bf16[128,128], index: 1, kind: input, shape index: {}]
  %s2 = inlined_call_operand.vmem [shape: bf16[64,32], index: 2, kind: input, shape index: {}]
  %s3 = inlined_call_operand.hbm [shape: f32[1,32], index: 3, kind: input, shape index: {}]
  %s4 = inlined_call_operand.vmem [shape: bf16[32,128], index: 4, kind: input, shape index: {}]
  %s5 = inlined_call_operand.hbm [shape: f32[16,128], index: 5, kind: output, shape index: {}]
  %s6 = sld [smem:[#allocation0]]
  $region34: #{tpu_custom_call.1} parent=0
    _
  %s8 = ssub.s32 1, %s6
  %s9 = scalar_select 0, %s8, %s6
  $region1: #{tpu_custom_call.1} parent=0
    #allocation2 [shape = 'u8[512]{0}', space=vmem, size = 0x400, scoped, tag = 'input window, operand 3, single buffered']
    #allocation3 [shape = 's32[1]{0}', space=sflag, size = 0x4, scoped, tag = 'scoped memory for tpu_custom_call.1']
    #allocation4 [shape = 's32[1]{0}', space=sflag, size = 0x4, scoped, tag = 'scoped memory for tpu_custom_call.1']
    #allocation5 [shape = 'u8[8192]{0}', space=vmem, size = 0x2000, scoped, tag = 'output window, operand 0, single buffered']
    %10 = vsyncpa [#allocation3], 0
    %11 = vsyncpa [#allocation4], 0
    // Predicated region
    $region2: #{tpu_custom_call.1} parent=1 // pred_check
      _
    $region3: #{tpu_custom_call.1} parent=1 // pred_check_branch
      %13 = sbr.rel (0) target = $region5
    $region4: #{tpu_custom_call.1} parent=1 // pred_region
      _
    $region5: #{tpu_custom_call.1} parent=1 // pred_fallthru
      _
    // Predicated region
    $region6: #{tpu_custom_call.1} parent=1 // pred_check
      _
    $region7: #{tpu_custom_call.1} parent=1 // pred_check_branch
      %15 = sbr.rel (0) target = $region9
    $region8: #{tpu_custom_call.1} parent=1 // pred_region
      _
    $region9: #{tpu_custom_call.1} parent=1 // pred_fallthru
      _
    // Predicated region
    $region10: #{tpu_custom_call.1} parent=1 // pred_check
      _
    $region11: #{tpu_custom_call.1} parent=1 // pred_check_branch
      %17 = sbr.rel (0) target = $region13
    $region12: #{tpu_custom_call.1} parent=1 // pred_region
      _
    $region13: #{tpu_custom_call.1} parent=1 // pred_fallthru
      _
    // Predicated region
    $region14: #{tpu_custom_call.1} parent=1 // pred_check
      _
    $region15: #{tpu_custom_call.1} parent=1 // pred_check_branch
      %19 = sbr.rel (0) target = $region17
    $region16: #{tpu_custom_call.1} parent=1 // pred_region
      %s21 = ssub.s32 16, 16
      %22 = vsyncadd [#allocation3], %s21
      %s24 = sshll.u32 [#allocation2], 4
      %s25 = int_to_ptr.vmem [resolvable:$true] %s24
      %27 = dma.hbm_to_vmem [thread:$0]  %s3, 16, %s25, [#allocation3]
    $region17: #{tpu_custom_call.1} parent=1 // pred_fallthru
      _
    // Predicated region
    $region18: #{tpu_custom_call.1} parent=1 // pred_check
      _
    $region19: #{tpu_custom_call.1} parent=1 // pred_check_branch
      %29 = sbr.rel (0) target = $region21
    $region20: #{tpu_custom_call.1} parent=1 // pred_region
      _
    $region21: #{tpu_custom_call.1} parent=1 // pred_fallthru
      _
    // Predicated region
    $region22: #{tpu_custom_call.1} parent=1 // pred_check
      _
    $region23: #{tpu_custom_call.1} parent=1 // pred_check_branch
      %31 = sbr.rel (0) target = $region25
    $region24: #{tpu_custom_call.1} parent=1 // pred_region
      %32 = dma.done [#allocation3], 16
    $region25: #{tpu_custom_call.1} parent=1 // pred_fallthru
      _
    %v34 = vld [vmem:[%s0] sm:$0xff]
    %v35 = vld [vmem:[%s0 + $0x8] sm:$0xff]
    %v36 = vlaneseq
    %v37 = vand.u32 %v36, 127
    %38 = vset.pattern.permute.xlu0 0
    %39 = vperm.xlu0 %38, %v34
    %v40 = vpop.permute.xlu0 %39
    %41 = vset.pattern.permute.xlu0 0
    %42 = vperm.xlu0 %41, %v35
    %v43 = vpop.permute.xlu0 %42
    %vm44 = vcmp.eq.s32.totalorder %v37, %v40
    %vm45 = vcmp.eq.s32.totalorder %v37, %v43
    %v46 = vsel %vm44, 1, 0
    %v47 = vsel %vm45, 1, 0
    %v48 = vcvt.s32.f32 %v46
    %v49 = vcvt.s32.f32 %v47
    %v50 = vpack.c.bf16 %v49, %v48
    %v51 = vld [vmem:[%s1] sm:$0xf]
    %v52 = vld [vmem:[%s1 + $0x4] sm:$0xf]
    %v53 = vld [vmem:[%s1 + $0x8] sm:$0xf]
    %v54 = vld [vmem:[%s1 + $0xc] sm:$0xf]
    %v55 = vld [vmem:[%s1 + $0x10] sm:$0xf]
    %v56 = vld [vmem:[%s1 + $0x14] sm:$0xf]
    %v57 = vld [vmem:[%s1 + $0x18] sm:$0xf]
    %v58 = vld [vmem:[%s1 + $0x1c] sm:$0xf]
    %v59 = vld [vmem:[%s1 + $0x20] sm:$0xf]
    %v60 = vld [vmem:[%s1 + $0x24] sm:$0xf]
    %v61 = vld [vmem:[%s1 + $0x28] sm:$0xf]
    %v62 = vld [vmem:[%s1 + $0x2c] sm:$0xf]
    %v63 = vld [vmem:[%s1 + $0x30] sm:$0xf]
    %v64 = vld [vmem:[%s1 + $0x34] sm:$0xf]
    %v65 = vld [vmem:[%s1 + $0x38] sm:$0xf]
    %v66 = vld [vmem:[%s1 + $0x3c] sm:$0xf]
    %v83 = vunpack.c.l.b16 %v51
    %v84 = vunpack.c.l.b16 %v52
    %v85 = vunpack.c.l.b16 %v53
    %v86 = vunpack.c.l.b16 %v54
    %v87 = vunpack.c.l.b16 %v55
    %v88 = vunpack.c.l.b16 %v56
    %v89 = vunpack.c.l.b16 %v57
    %v90 = vunpack.c.l.b16 %v58
    %v91 = vunpack.c.l.b16 %v59
    %v92 = vunpack.c.l.b16 %v60
    %v93 = vunpack.c.l.b16 %v61
    %v94 = vunpack.c.l.b16 %v62
    %v95 = vunpack.c.l.b16 %v63
    %v96 = vunpack.c.l.b16 %v64
    %v97 = vunpack.c.l.b16 %v65
    %v98 = vunpack.c.l.b16 %v66
    %v99 = vpack.c.b16 %v84, %v83
    %v100 = vpack.c.b16 %v86, %v85
    %v101 = vpack.c.b16 %v88, %v87
    %v102 = vpack.c.b16 %v90, %v89
    %v103 = vpack.c.b16 %v92, %v91
    %v104 = vpack.c.b16 %v94, %v93
    %v105 = vpack.c.b16 %v96, %v95
    %v106 = vpack.c.b16 %v98, %v97
    %115 = vmatprep.subr.bf16.mxu0 0
    %116 = vmatpush1.bf16.msra.mxu0 %v99
    %117 = vmatprep.subr.bf16.mxu0 0
    %118 = vmatpush1.bf16.msra.mxu0 %v100
    %119 = vmatprep.subr.bf16.mxu0 0
    %120 = vmatpush1.bf16.msra.mxu0 %v101
    %121 = vmatprep.subr.bf16.mxu0 0
    %122 = vmatpush1.bf16.msra.mxu0 %v102
    %123 = vmatprep.subr.bf16.mxu0 0
    %124 = vmatpush1.bf16.msra.mxu0 %v103
    %125 = vmatprep.subr.bf16.mxu0 0
    %126 = vmatpush1.bf16.msra.mxu0 %v104
    %127 = vmatprep.subr.bf16.mxu0 0
    %128 = vmatpush1.bf16.msra.mxu0 %v105
    %129 = vmatprep.subr.bf16.mxu0 0
    %130 = vmatpush1.bf16.msra.mxu0 %v106
    %131 = vmatprep.subr.bf16.mxu0 0
    %132 = vmatpush1.bf16.msra.mxu0 0
    %133 = vmatprep.subr.bf16.mxu0 0
    %134 = vmatpush1.bf16.msra.mxu0 0
    %135 = vmatprep.subr.bf16.mxu0 0
    %136 = vmatpush1.bf16.msra.mxu0 0
    %137 = vmatprep.subr.bf16.mxu0 0
    %138 = vmatpush1.bf16.msra.mxu0 0
    %139 = vmatprep.subr.bf16.mxu0 0
    %140 = vmatpush1.bf16.msra.mxu0 0
    %141 = vmatprep.subr.bf16.mxu0 0
    %142 = vmatpush1.bf16.msra.mxu0 0
    %143 = vmatprep.subr.bf16.mxu0 0
    %144 = vmatpush1.bf16.msra.mxu0 0
    %145 = vmatprep.subr.bf16.mxu0 0
    %146 = vmatpush1.bf16.msra.mxu0 0
    %147 = vmatprep.mubr.bf16.mxu0 0
    %148 = vmatmul.mubr.bf16.gmra.mrb[0].mxu0 %v50
    %v149 = vpop.f32.mrb[0].mxu0
    %v150 = vadd.f32 0.0, %v149
    %v151 = vpop.f32.mrb[0].mxu0
    %v152 = vpop.f32.mrb[0].mxu0
    %v153 = vadd.f32 0.0, %v152
    %v154 = vpop.f32.mrb[0].mxu0
    %155 = vdwg.mxu0
    %v156 = vmul.f32 %v150, %v150
    %v157 = vmul.f32 %v153, %v153
    %v158 = vmul.f32 %v150, %v156
    %v159 = vmul.f32 %v153, %v157
    %v160 = vmul.f32 %v158, 0.044715
    %v161 = vmul.f32 %v159, 0.044715
    %v162 = vadd.f32 %v150, %v160
    %v163 = vadd.f32 %v153, %v161
    %v164 = vmul.f32 %v162, 0.7978846
    %v165 = vmul.f32 %v163, 0.7978846
    %v166 = vtanh.pop %v164
    %v167 = vtanh.pop %v165
    %v168 = vadd.f32 %v166, 1.0
    %v169 = vadd.f32 %v167, 1.0
    %v170 = vmul.f32 %v168, 0.5
    %v171 = vmul.f32 %v169, 0.5
    %v172 = vmul.f32 %v150, %v170
    %v173 = vmul.f32 %v153, %v171
    %v174 = vpack.c.bf16 %v173, %v172
    %v175 = vld [vmem:[%s2] sm:$0xf]
    %v176 = vld [vmem:[%s2 + $0x4] sm:$0xf]
    %v177 = vld [vmem:[%s2 + $0x8] sm:$0xf]
    %v178 = vld [vmem:[%s2 + $0xc] sm:$0xf]
    %v179 = vld [vmem:[%s2 + $0x10] sm:$0xf]
    %v180 = vld [vmem:[%s2 + $0x14] sm:$0xf]
    %v181 = vld [vmem:[%s2 + $0x18] sm:$0xf]
    %v182 = vld [vmem:[%s2 + $0x1c] sm:$0xf]
    %v183 = vld [vmem:[#allocation2] sm:$0x1]
    %v185 = vlaneseq
    %v186 = vshrl.u32 %v185, 7
    %v187 = vsub.s32 0, %v186
    %v188 = vrot.slane %v183, %v187
    %191 = vrot.lane.b32.xlu0 %v174, 96
    %v192 = vpop.permute.xlu0 %191
    %v201 = vunpack.c.l.b16 %v175
    %v202 = vunpack.c.l.b16 %v176
    %v203 = vunpack.c.l.b16 %v177
    %v204 = vunpack.c.l.b16 %v178
    %v205 = vunpack.c.l.b16 %v179
    %v206 = vunpack.c.l.b16 %v180
    %v207 = vunpack.c.l.b16 %v181
    %v208 = vunpack.c.l.b16 %v182
    %v209 = vpack.c.b16 %v202, %v201
    %v210 = vpack.c.b16 %v204, %v203
    %v211 = vpack.c.b16 %v206, %v205
    %v212 = vpack.c.b16 %v208, %v207
    %vm217 = vcmask 523264
    %v219 = vsel %vm217, %v192, 0
    %221 = vmatprep.subr.bf16.mxu0 0
    %222 = vmatpush1.bf16.msra.mxu0 %v209
    %223 = vmatprep.subr.bf16.mxu0 0
    %224 = vmatpush1.bf16.msra.mxu0 %v210
    %225 = vmatprep.subr.bf16.mxu0 0
    %226 = vmatpush1.bf16.msra.mxu0 %v211
    %227 = vmatprep.subr.bf16.mxu0 0
    %228 = vmatpush1.bf16.msra.mxu0 %v212
    %229 = vmatprep.subr.bf16.mxu0 0
    %230 = vmatpush1.bf16.msra.mxu0 0
    %231 = vmatprep.subr.bf16.mxu0 0
    %232 = vmatpush1.bf16.msra.mxu0 0
    %233 = vmatprep.subr.bf16.mxu0 0
    %234 = vmatpush1.bf16.msra.mxu0 0
    %235 = vmatprep.subr.bf16.mxu0 0
    %236 = vmatpush1.bf16.msra.mxu0 0
    %237 = vmatprep.subr.bf16.mxu0 0
    %238 = vmatpush1.bf16.msra.mxu0 0
    %239 = vmatprep.subr.bf16.mxu0 0
    %240 = vmatpush1.bf16.msra.mxu0 0
    %241 = vmatprep.subr.bf16.mxu0 0
    %242 = vmatpush1.bf16.msra.mxu0 0
    %243 = vmatprep.subr.bf16.mxu0 0
    %244 = vmatpush1.bf16.msra.mxu0 0
    %245 = vmatprep.subr.bf16.mxu0 0
    %246 = vmatpush1.bf16.msra.mxu0 0
    %247 = vmatprep.subr.bf16.mxu0 0
    %248 = vmatpush1.bf16.msra.mxu0 0
    %249 = vmatprep.subr.bf16.mxu0 0
    %250 = vmatpush1.bf16.msra.mxu0 0
    %251 = vmatprep.subr.bf16.mxu0 0
    %252 = vmatpush1.bf16.msra.mxu0 0
    %253 = vmatprep.mubr.bf16.mxu0 0
    %254 = vmatmul.mubr.bf16.gmra.mrb[0].mxu0 %v219
    %v255 = vpop.f32.mrb[0].mxu0
    %v256 = vadd.f32 %v188, %v255
    %v257 = vpop.f32.mrb[0].mxu0
    %v258 = vpop.f32.mrb[0].mxu0
    %v259 = vadd.f32 %v188, %v258
    %v260 = vpop.f32.mrb[0].mxu0
    %261 = vdwg.mxu0
    %v262 = vadd.f32 %v256, %v150
    %v263 = vadd.f32 %v259, %v153
    %v264 = vpack.c.bf16 %v263, %v262
    %v265 = vld [vmem:[%s4] sm:$0xf]
    %v266 = vld [vmem:[%s4 + $0x4] sm:$0xf]
    %v267 = vld [vmem:[%s4 + $0x8] sm:$0xf]
    %v268 = vld [vmem:[%s4 + $0xc] sm:$0xf]
    %v273 = vunpack.c.l.b16 %v265
    %v274 = vunpack.c.l.b16 %v266
    %v275 = vunpack.c.l.b16 %v267
    %v276 = vunpack.c.l.b16 %v268
    %v277 = vpack.c.b16 %v274, %v273
    %v278 = vpack.c.b16 %v276, %v275
    %vm281 = vcmask 261120
    %v283 = vsel %vm281, %v264, 0
    %285 = vmatprep.subr.bf16.mxu0 0
    %286 = vmatpush1.bf16.msra.mxu0 %v277
    %287 = vmatprep.subr.bf16.mxu0 0
    %288 = vmatpush1.bf16.msra.mxu0 %v278
    %289 = vmatprep.subr.bf16.mxu0 0
    %290 = vmatpush1.bf16.msra.mxu0 0
    %291 = vmatprep.subr.bf16.mxu0 0
    %292 = vmatpush1.bf16.msra.mxu0 0
    %293 = vmatprep.subr.bf16.mxu0 0
    %294 = vmatpush1.bf16.msra.mxu0 0
    %295 = vmatprep.subr.bf16.mxu0 0
    %296 = vmatpush1.bf16.msra.mxu0 0
    %297 = vmatprep.subr.bf16.mxu0 0
    %298 = vmatpush1.bf16.msra.mxu0 0
    %299 = vmatprep.subr.bf16.mxu0 0
    %300 = vmatpush1.bf16.msra.mxu0 0
    %301 = vmatprep.subr.bf16.mxu0 0
    %302 = vmatpush1.bf16.msra.mxu0 0
    %303 = vmatprep.subr.bf16.mxu0 0
    %304 = vmatpush1.bf16.msra.mxu0 0
    %305 = vmatprep.subr.bf16.mxu0 0
    %306 = vmatpush1.bf16.msra.mxu0 0
    %307 = vmatprep.subr.bf16.mxu0 0
    %308 = vmatpush1.bf16.msra.mxu0 0
    %309 = vmatprep.subr.bf16.mxu0 0
    %310 = vmatpush1.bf16.msra.mxu0 0
    %311 = vmatprep.subr.bf16.mxu0 0
    %312 = vmatpush1.bf16.msra.mxu0 0
    %313 = vmatprep.subr.bf16.mxu0 0
    %314 = vmatpush1.bf16.msra.mxu0 0
    %315 = vmatprep.subr.bf16.mxu0 0
    %316 = vmatpush1.bf16.msra.mxu0 0
    %317 = vmatprep.mubr.bf16.mxu0 0
    %318 = vmatmul.mubr.bf16.gmra.mrb[0].mxu0 %v283
    %v319 = vpop.f32.mrb[0].mxu0
    %v320 = vadd.f32 0.0, %v319
    %v321 = vpop.f32.mrb[0].mxu0
    %v322 = vpop.f32.mrb[0].mxu0
    %v323 = vadd.f32 0.0, %v322
    %v324 = vpop.f32.mrb[0].mxu0
    %325 = vdwg.mxu0
    %326 = vst [vmem:[#allocation5] sm:$0xff] %v320
    %327 = vst [vmem:[#allocation5 + $0x8] sm:$0xff] %v323
    // Predicated region
    $region26: #{tpu_custom_call.1} parent=1 // pred_check
      _
    $region27: #{tpu_custom_call.1} parent=1 // pred_check_branch
      %329 = sbr.rel (0) target = $region29
    $region28: #{tpu_custom_call.1} parent=1 // pred_region
      %s331 = ssub.s32 256, 256
      %332 = vsyncadd [#allocation4], %s331
      %s333 = sshll.u32 [#allocation5], 4
      %s334 = int_to_ptr.vmem [resolvable:$true] %s333
      %339 = dma.vmem_to_hbm [thread:$0]  %s334, 256, %s5, [#allocation4], 128, 128, 8
    $region29: #{tpu_custom_call.1} parent=1 // pred_fallthru
      _
    // Predicated region
    $region30: #{tpu_custom_call.1} parent=1 // pred_check
      _
    $region31: #{tpu_custom_call.1} parent=1 // pred_check_branch
      %341 = sbr.rel (0) target = $region33
    $region32: #{tpu_custom_call.1} parent=1 // pred_region
      %342 = dma.done [#allocation4], 256
    $region33: #{tpu_custom_call.1} parent=1 // pred_fallthru
      _
    %343 = vsyncpa [#allocation3], 1
    %344 = vsyncpa [#allocation4], 1

</llo_original>
